<compile_context>
chip_gen: v7x
topology: tpu7x:2x2x1
jax: 0.10.0
libtpu: 0.0.40
codegen_flags: <defaults>
</compile_context>

<pallas_src>
import functools

import jax
import jax.numpy as jnp
from jax.experimental import pallas as pl
from jax.experimental.pallas import tpu as pltpu


def _round_up(x, m):
    return ((x + m - 1) // m) * m


def _vmem_capacity_bytes():
    try:
        return int(pltpu.get_tpu_info().vmem_capacity_bytes)
    except Exception:
        return 64 << 20  # conservative (v7x per-TC size)


def _tensorcores_per_chip():
    try:
        kind = jax.devices()[0].device_kind.lower()
    except Exception:
        return 1
    # v4 / v5p / v7x expose 2 TensorCores per device.
    return 2 if any(t in kind for t in ("v4", "v5p", "7")) else 1


def _attn_general_kernel(lhs_ref, hist_ref, out_ref, *, s1_valid, s1_padded,
                         block_s2, mask, approx):
    # lhs_ref:  [bs2, B*N]   (W already applied on one side, wrapper-side)
    # hist_ref: [B*N, S1p]   (lane-dense, grid-invariant)
    # out_ref:  [bs2, S1p]
    e = jnp.dot(lhs_ref[...], hist_ref[...],
                preferred_element_type=jnp.float32)            # [bs2, S1p]
    bs2, s1p = e.shape
    neg = jnp.float32(-1e11)

    if mask:
        col = jax.lax.broadcasted_iota(jnp.int32, (bs2, s1p), 1)
        row = (jax.lax.broadcasted_iota(jnp.int32, (bs2, s1p), 0)
               + pl.program_id(0) * block_s2)
        keep = col <= row                     # tril keep + triu(-1e11), as in PyTorch
        if s1_padded:
            keep = jnp.logical_and(keep, col < s1_valid)
        e = jnp.where(keep, e, neg)
    elif s1_padded:
        col = jax.lax.broadcasted_iota(jnp.int32, (bs2, s1p), 1)
        e = jnp.where(col < s1_valid, e, neg)
    # Padded columns underflow to exactly 0 in exp() because every valid row keeps
    # at least column 0 un-masked, so the row max is always a finite real energy.

    # F.softmax over the seq axis (implicit dim=1 for a 2-D tensor), in f32.
    m = jnp.max(e, axis=-1, keepdims=True)
    p = jnp.exp(e - m)
    l = jnp.sum(p, axis=-1, keepdims=True)
    out_ref[...] = (p * pl.reciprocal(l, approx=approx)).astype(out_ref.dtype)


def attn_general(out_state, history, w, b=None, *, mask=False, block_s2=512,
                 compute_dtype=jnp.bfloat16, out_dtype=jnp.float32,
                 interpret=False):
    """out_state: [S2, B, N], history: [S1, B, N], w: [N, N], b: [N] -> [S2, S1].

    `b` (the Linear bias) is accepted for API parity but unused: it shifts every
    row of the energy matrix by a constant, which softmax cancels exactly.
    """
    del b
    s2, batch, n = out_state.shape
    s1 = history.shape[0]
    bn = batch * n
    cdt = jnp.dtype(compute_dtype)
    approx = cdt != jnp.dtype(jnp.float32)

    # Apply the Linear weight to the *smaller* sequence side as one XLA matmul
    # (kept in f32), then stream both activations in compute_dtype.
    #   energy[i,j] = sum_{b,n,m} O[i,b,n] W[n,m] H[j,b,m]
    if s2 <= s1:
        lhs3 = jnp.einsum('ibn,nm->ibm', out_state.astype(jnp.float32),
                          w.astype(jnp.float32))
        rhs3 = history
    else:
        lhs3 = out_state
        rhs3 = jnp.einsum('jbm,nm->jbn', history.astype(jnp.float32),
                          w.astype(jnp.float32))

    # Lane-dense S1 (multiple of 128) and a sublane-aligned S2 row block.
    s1p = _round_up(s1, 128)
    bs2 = min(_round_up(s2, 8), block_s2)
    # Give 2-TensorCore chips at least a 2-step "parallel" grid when possible.
    if _tensorcores_per_chip() > 1 and s2 > 8 and _round_up(s2, bs2) // bs2 < 2:
        bs2 = _round_up(-(-s2 // 2), 8)
    s2p = _round_up(s2, bs2)

    # Fused pad + reshape + transpose + cast chains (single XLA pass each).
    lhs = lhs3.reshape(s2, bn).astype(cdt)                       # [S2, B*N]
    if s2p != s2:
        lhs = jnp.pad(lhs, ((0, s2p - s2), (0, 0)))
    rhs = rhs3.reshape(s1, bn).T.astype(cdt)                     # [B*N, S1]
    if s1p != s1:
        rhs = jnp.pad(rhs, ((0, 0), (0, s1p - s1)))

    kernel = functools.partial(_attn_general_kernel, s1_valid=s1,
                               s1_padded=(s1p != s1), block_s2=bs2,
                               mask=mask, approx=approx)

    # VMEM budget: resident history slab (single-buffered) + double-buffered lhs
    # tile + double-buffered output tile + in-kernel f32 temps, with headroom.
    c_item = cdt.itemsize
    o_item = jnp.dtype(out_dtype).itemsize
    est = (bn * s1p * c_item
           + 2 * bs2 * bn * c_item
           + 2 * bs2 * s1p * o_item
           + 6 * bs2 * s1p * 4
           + (2 << 20))
    cap = _vmem_capacity_bytes()
    vmem_bytes = int(min(max(est, 32 << 20), cap - (12 << 20), int(cap * 0.85)))
    vmem_bytes = max(vmem_bytes, 16 << 20)

    cost = pl.CostEstimate(
        flops=2 * s2p * s1p * bn,
        transcendentals=s2p * s1p,
        bytes_accessed=(s2p * bn * c_item + bn * s1p * c_item
                        + s2p * s1p * o_item))

    def _call(history_spec):
        return pl.pallas_call(
            kernel,
            out_shape=jax.ShapeDtypeStruct((s2p, s1p), jnp.dtype(out_dtype)),
            grid=(s2p // bs2,),
            in_specs=[
                pl.BlockSpec((bs2, bn), lambda i: (i, 0)),       # out_state tile
                history_spec,                                    # resident history
            ],
            out_specs=pl.BlockSpec((bs2, s1p), lambda i: (i, 0)),
            compiler_params=pltpu.CompilerParams(
                dimension_semantics=("parallel",),
                vmem_limit_bytes=vmem_bytes),
            cost_estimate=cost,
            interpret=interpret,
        )(lhs, rhs)

    try:
        # Grid-invariant slab: single-buffered (halves the largest VMEM item).
        out = _call(pl.BlockSpec((bn, s1p), lambda i: (0, 0),
                                 pipeline_mode=pl.Buffered(1)))
    except Exception:
        # Fallback for jax versions without pipeline_mode / Buffered support.
        out = _call(pl.BlockSpec((bn, s1p), lambda i: (0, 0)))

    return out[:s2, :s1]


def attn_general_ref(out_state, history, w, b, mask=False):
    """Pure-JAX reference mirroring the PyTorch forward (bias included)."""
    hp = jnp.einsum('jbn,mn->jbm', history, w) + b           # nn.Linear(history)
    e = jnp.einsum('ibn,jbn->ij', out_state, hp)             # flattened dot
    if mask:
        s2, s1 = e.shape
        row = jnp.arange(s2)[:, None]
        col = jnp.arange(s1)[None, :]
        e = jnp.where(col <= row, e, -1e11)
    return jax.nn.softmax(e, axis=-1)


if __name__ == "__main__":
    S1 = 8      # history seq_len
    S2 = 8      # out_state state_len
    B = 2       # batch
    N = 32      # hidden_size

    key = jax.random.PRNGKey(0)
    k1, k2, k3, k4 = jax.random.split(key, 4)
    out_state = jax.random.normal(k1, (S2, B, N), dtype=jnp.float32)
    history = jax.random.normal(k2, (S1, B, N), dtype=jnp.float32)
    # nn.Linear(hidden, hidden) parameters, deterministic init
    w = jax.random.normal(k3, (N, N), dtype=jnp.float32) * 0.1
    b = jax.random.normal(k4, (N,), dtype=jnp.float32) * 0.1

    for m in (False, True):
        ref = attn_general_ref(out_state, history, w, b, mask=m)
        # Exact-semantics path (f32 streaming, exact reciprocal).
        out_f32 = jax.block_until_ready(
            attn_general(out_state, history, w, b, mask=m,
                         compute_dtype=jnp.float32))
        assert out_f32.shape == (S2, S1)
        assert jnp.allclose(out_f32, ref, atol=1e-4, rtol=1e-4), f"f32 mismatch mask={m}"
        # Fast bf16-streaming default path (loosened tolerance).
        out_bf = jax.block_until_ready(attn_general(out_state, history, w, b, mask=m))
        assert out_bf.shape == (S2, S1)
        assert jnp.allclose(out_bf, ref, atol=3e-2), f"bf16 mismatch mask={m}"
        assert jnp.allclose(out_bf.sum(axis=-1), 1.0, atol=1e-2), "rows not normalized"

    # Exercise a multi-block S2 grid (program_id-offset causal mask) + S1 padding.
    S1b, S2b = 40, 24
    ka, kb = jax.random.split(jax.random.PRNGKey(1), 2)
    os2 = jax.random.normal(ka, (S2b, B, N), dtype=jnp.float32)
    h2 = jax.random.normal(kb, (S1b, B, N), dtype=jnp.float32)
    ref2 = attn_general_ref(os2, h2, w, b, mask=True)
    out2 = jax.block_until_ready(attn_general(os2, h2, w, b, mask=True, block_s2=8))
    assert out2.shape == (S2b, S1b)
    assert jnp.allclose(out2, ref2, atol=3e-2), "bf16 mismatch tiled/masked"
    out2f = jax.block_until_ready(
        attn_general(os2, h2, w, b, mask=True, block_s2=8,
                     compute_dtype=jnp.float32))
    assert jnp.allclose(out2f, ref2, atol=1e-4, rtol=1e-4), "f32 mismatch tiled/masked"

    print("KERNEL_OK")
</pallas_src>

<mosaic_0001>
module attributes {stable_mosaic.version = 11 : i64} {
  func.func @_attn_general_kernel(%arg0: i32, %arg1: memref<8x64xf32, #tpu.memory_space<vmem>>, %arg2: memref<64x128xf32, #tpu.memory_space<vmem>>, %arg3: memref<8x128xf32, #tpu.memory_space<vmem>>) attributes {dimension_semantics = [#tpu.dimension_semantics<parallel>], iteration_bounds = array<i64: 1>, scalar_prefetch = 0 : i64, scratch_operands = 0 : i64, tpu.core_type = #tpu.core_type<tc>, window_params = [{transform_indices = @transform_0, window_bounds = array<i64: 8, 64>}, {pipeline_mode = #tpu.pipeline_mode<synchronous>, transform_indices = @transform_1, window_bounds = array<i64: 64, 128>}, {transform_indices = @transform_2, window_bounds = array<i64: 8, 128>}]} {
    %c0 = arith.constant 0 : index
    %c0_0 = arith.constant 0 : index
    %0 = vector.load %arg1[%c0, %c0_0] : memref<8x64xf32, #tpu.memory_space<vmem>>, vector<8x64xf32>
    %c0_1 = arith.constant 0 : index
    %c0_2 = arith.constant 0 : index
    %1 = vector.load %arg2[%c0_1, %c0_2] : memref<64x128xf32, #tpu.memory_space<vmem>>, vector<64x128xf32>
    %cst = arith.constant dense<0.000000e+00> : vector<8x128xf32>
    %2 = tpu.matmul %0, %1, %cst {dimension_numbers = #tpu.dot_dimension_numbers<[1], [0], [0], [1], [0, 0, 1, 1], [], []>} : vector<8x64xf32>, vector<64x128xf32>, vector<8x128xf32> -> vector<8x128xf32>
    %3 = tpu.iota {dimensions = array<i32: 1>} : vector<8x128xi32>
    %c8_i32 = arith.constant 8 : i32
    %4 = vector.broadcast %c8_i32 : i32 to vector<8x128xi32>
    %5 = arith.cmpi slt, %3, %4 : vector<8x128xi32>
    %cst_3 = arith.constant -9.99999979E+10 : f32
    %6 = vector.broadcast %cst_3 : f32 to vector<8x128xf32>
    %7 = arith.select %5, %2, %6 : vector<8x128xi1>, vector<8x128xf32>
    %cst_4 = arith.constant dense<0xFF800000> : vector<8xf32>
    %8 = vector.multi_reduction <maximumf>, %7, %cst_4 [1] : vector<8x128xf32> to vector<8xf32>
    %9 = vector.shape_cast %8 : vector<8xf32> to vector<8x1xf32>
    %10 = vector.broadcast %9 : vector<8x1xf32> to vector<8x128xf32>
    %11 = arith.subf %7, %10 : vector<8x128xf32>
    %12 = math.exp %11 : vector<8x128xf32>
    %cst_5 = arith.constant dense<0.000000e+00> : vector<8xf32>
    %13 = vector.multi_reduction <add>, %12, %cst_5 [1] : vector<8x128xf32> to vector<8xf32>
    %14 = vector.shape_cast %13 : vector<8xf32> to vector<8x1xf32>
    %15 = tpu.reciprocal %14 : vector<8x1xf32> -> vector<8x1xf32>
    %16 = vector.broadcast %15 : vector<8x1xf32> to vector<8x128xf32>
    %17 = arith.mulf %12, %16 : vector<8x128xf32>
    %c0_6 = arith.constant 0 : index
    %c0_7 = arith.constant 0 : index
    %18 = vector.load %arg3[%c0_6, %c0_7] : memref<8x128xf32, #tpu.memory_space<vmem>>, vector<8x128xf32>
    tpu.vector_store %arg3[%c0_6, %c0_7], %17 {strides = array<i32>} : memref<8x128xf32, #tpu.memory_space<vmem>>, vector<8x128xf32>,
    return
  }
  func.func @transform_0(%arg0: i32) -> (i32, i32) {
    %c0_i32 = arith.constant 0 : i32
    %c0_i32_0 = arith.constant 0 : i32
    return %arg0, %c0_i32 : i32, i32
  }
  func.func @transform_1(%arg0: i32) -> (i32, i32) {
    %c0_i32 = arith.constant 0 : i32
    %c0_i32_0 = arith.constant 0 : i32
    %c0_i32_1 = arith.constant 0 : i32
    return %c0_i32, %c0_i32_0 : i32, i32
  }
  func.func @transform_2(%arg0: i32) -> (i32, i32) {
    %c0_i32 = arith.constant 0 : i32
    %c0_i32_0 = arith.constant 0 : i32
    return %arg0, %c0_i32 : i32, i32
  }
}

module attributes {stable_mosaic.version = 11 : i64} {
  func.func @_attn_general_kernel(%arg0: i32, %arg1: memref<8x64xf32, #tpu.memory_space<vmem>>, %arg2: memref<64x128xf32, #tpu.memory_space<vmem>>, %arg3: memref<8x128xf32, #tpu.memory_space<vmem>>) attributes {dimension_semantics = [#tpu.dimension_semantics<parallel>], iteration_bounds = array<i64: 1>, scalar_prefetch = 0 : i64, scratch_operands = 0 : i64, tpu.core_type = #tpu.core_type<tc>, window_params = [{transform_indices = @transform_0, window_bounds = array<i64: 8, 64>}, {pipeline_mode = #tpu.pipeline_mode<synchronous>, transform_indices = @transform_1, window_bounds = array<i64: 64, 128>}, {transform_indices = @transform_2, window_bounds = array<i64: 8, 128>}]} {
    %c0 = arith.constant 0 : index
    %c0_0 = arith.constant 0 : index
    %0 = vector.load %arg1[%c0, %c0_0] : memref<8x64xf32, #tpu.memory_space<vmem>>, vector<8x64xf32>
    %c0_1 = arith.constant 0 : index
    %c0_2 = arith.constant 0 : index
    %1 = vector.load %arg2[%c0_1, %c0_2] : memref<64x128xf32, #tpu.memory_space<vmem>>, vector<64x128xf32>
    %cst = arith.constant dense<0.000000e+00> : vector<8x128xf32>
    %2 = tpu.matmul %0, %1, %cst {dimension_numbers = #tpu.dot_dimension_numbers<[1], [0], [0], [1], [0, 0, 1, 1], [], []>} : vector<8x64xf32>, vector<64x128xf32>, vector<8x128xf32> -> vector<8x128xf32>
    %3 = tpu.iota {dimensions = array<i32: 1>} : vector<8x128xi32>
    %c8_i32 = arith.constant 8 : i32
    %4 = vector.broadcast %c8_i32 : i32 to vector<8x128xi32>
    %5 = arith.cmpi slt, %3, %4 : vector<8x128xi32>
    %cst_3 = arith.constant -9.99999979E+10 : f32
    %6 = vector.broadcast %cst_3 : f32 to vector<8x128xf32>
    %7 = arith.select %5, %2, %6 : vector<8x128xi1>, vector<8x128xf32>
    %cst_4 = arith.constant dense<0xFF800000> : vector<8xf32>
    %8 = vector.multi_reduction <maximumf>, %7, %cst_4 [1] : vector<8x128xf32> to vector<8xf32>
    %9 = vector.shape_cast %8 : vector<8xf32> to vector<8x1xf32>
    %10 = vector.broadcast %9 : vector<8x1xf32> to vector<8x128xf32>
    %11 = arith.subf %7, %10 : vector<8x128xf32>
    %12 = math.exp %11 : vector<8x128xf32>
    %cst_5 = arith.constant dense<0.000000e+00> : vector<8xf32>
    %13 = vector.multi_reduction <add>, %12, %cst_5 [1] : vector<8x128xf32> to vector<8xf32>
    %14 = vector.shape_cast %13 : vector<8xf32> to vector<8x1xf32>
    %15 = tpu.reciprocal %14 : vector<8x1xf32> -> vector<8x1xf32>
    %16 = vector.broadcast %15 : vector<8x1xf32> to vector<8x128xf32>
    %17 = arith.mulf %12, %16 : vector<8x128xf32>
    %c0_6 = arith.constant 0 : index
    %c0_7 = arith.constant 0 : index
    %18 = vector.load %arg3[%c0_6, %c0_7] : memref<8x128xf32, #tpu.memory_space<vmem>>, vector<8x128xf32>
    tpu.vector_store %arg3[%c0_6, %c0_7], %17 {strides = array<i32>} : memref<8x128xf32, #tpu.memory_space<vmem>>, vector<8x128xf32>,
    return
  }
  func.func @transform_0(%arg0: i32) -> (i32, i32) {
    %c0_i32 = arith.constant 0 : i32
    %c0_i32_0 = arith.constant 0 : i32
    return %arg0, %c0_i32 : i32, i32
  }
  func.func @transform_1(%arg0: i32) -> (i32, i32) {
    %c0_i32 = arith.constant 0 : i32
    %c0_i32_0 = arith.constant 0 : i32
    %c0_i32_1 = arith.constant 0 : i32
    return %c0_i32, %c0_i32_0 : i32, i32
  }
  func.func @transform_2(%arg0: i32) -> (i32, i32) {
    %c0_i32 = arith.constant 0 : i32
    %c0_i32_0 = arith.constant 0 : i32
    return %arg0, %c0_i32 : i32, i32
  }
}

</mosaic_0001>

<llo_original>
// kernel: tpu_custom_call.1
$region0: #{tpu_custom_call.1}
  #allocation0 [shape = 'u32[]', space=smem, size = 0x4, offset = 0x4, fixed_abs, tag = 'smem constant byte address 0x4 - core index']
  #allocation1 [shape = 'u32[144,128]{1,0:T(1,128)}', space=vmem, size = 0x12000, scoped, tag = 'internal scratch']
  %s0 = inlined_call_operand.hbm [shape: f32[8,64], index: 0, kind: input, shape index: {}]
  %s1 = inlined_call_operand.hbm [shape: f32[64,128], index: 1, kind: input, shape index: {}]
  %s2 = inlined_call_operand.hbm [shape: f32[8,128], index: 2, kind: output, shape index: {}]
  %s3 = sld [smem:[#allocation0]]
  $region26: #{tpu_custom_call.1} parent=0
    _
  %s5 = ssub.s32 1, %s3
  %s6 = scalar_select 0, %s5, %s3
  $region1: #{tpu_custom_call.1} parent=0
    #allocation2 [shape = 'u8[4096]{0}', space=vmem, size = 0x1000, scoped, tag = 'input window, operand 0, single buffered']
    #allocation3 [shape = 's32[1]{0}', space=sflag, size = 0x4, scoped, tag = 'scoped memory for tpu_custom_call.1']
    #allocation4 [shape = 's32[1]{0}', space=sflag, size = 0x4, scoped, tag = 'scoped memory for tpu_custom_call.1']
    #allocation5 [shape = 'u8[32768]{0}', space=vmem, size = 0x8000, scoped, tag = 'input window, operand 1, single buffered']
    #allocation6 [shape = 's32[1]{0}', space=sflag, size = 0x4, scoped, tag = 'scoped memory for tpu_custom_call.1']
    #allocation7 [shape = 'u8[4096]{0}', space=vmem, size = 0x1000, scoped, tag = 'output window, operand 0, single buffered']
    %7 = vsyncpa [#allocation3], 0
    %8 = vsyncpa [#allocation6], 0
    %9 = vsyncpa [#allocation4], 0
    // Predicated region
    $region2: #{tpu_custom_call.1} parent=1 // pred_check
      _
    $region3: #{tpu_custom_call.1} parent=1 // pred_check_branch
      %11 = sbr.rel (0) target = $region5
    $region4: #{tpu_custom_call.1} parent=1 // pred_region
      %s13 = ssub.s32 128, 128
      %14 = vsyncadd [#allocation3], %s13
      %s16 = sshll.u32 [#allocation2], 4
      %s17 = int_to_ptr.vmem [resolvable:$true] %s16
      %19 = dma.hbm_to_vmem [thread:$0]  %s0, 128, %s17, [#allocation3]
    $region5: #{tpu_custom_call.1} parent=1 // pred_fallthru
      _
    // Predicated region
    $region6: #{tpu_custom_call.1} parent=1 // pred_check
      _
    $region7: #{tpu_custom_call.1} parent=1 // pred_check_branch
      %21 = sbr.rel (0) target = $region9
    $region8: #{tpu_custom_call.1} parent=1 // pred_region
      %s23 = ssub.s32 1024, 1024
      %24 = vsyncadd [#allocation6], %s23
      %s25 = sshll.u32 [#allocation5], 4
      %s26 = int_to_ptr.vmem [resolvable:$true] %s25
      %31 = dma.hbm_to_vmem [thread:$0]  %s1, 1024, %s26, [#allocation6], 128, 128, 8
    $region9: #{tpu_custom_call.1} parent=1 // pred_fallthru
      _
    // Predicated region
    $region10: #{tpu_custom_call.1} parent=1 // pred_check
      _
    $region11: #{tpu_custom_call.1} parent=1 // pred_check_branch
      %33 = sbr.rel (0) target = $region13
    $region12: #{tpu_custom_call.1} parent=1 // pred_region
      %34 = dma.done [#allocation3], 128
    $region13: #{tpu_custom_call.1} parent=1 // pred_fallthru
      _
    // Predicated region
    $region14: #{tpu_custom_call.1} parent=1 // pred_check
      _
    $region15: #{tpu_custom_call.1} parent=1 // pred_check_branch
      %36 = sbr.rel (0) target = $region17
    $region16: #{tpu_custom_call.1} parent=1 // pred_region
      %37 = dma.done [#allocation6], 1024
    $region17: #{tpu_custom_call.1} parent=1 // pred_fallthru
      _
    %v38 = vld [vmem:[#allocation2] sm:$0xff]
    %v39 = vld [vmem:[#allocation5] sm:$0xff]
    %v40 = vld [vmem:[#allocation5 + $0x8] sm:$0xff]
    %v41 = vld [vmem:[#allocation5 + $0x10] sm:$0xff]
    %v42 = vld [vmem:[#allocation5 + $0x18] sm:$0xff]
    %v43 = vld [vmem:[#allocation5 + $0x20] sm:$0xff]
    %v44 = vld [vmem:[#allocation5 + $0x28] sm:$0xff]
    %v45 = vld [vmem:[#allocation5 + $0x30] sm:$0xff]
    %v46 = vld [vmem:[#allocation5 + $0x38] sm:$0xff]
    %vm47 = vcmask 523264
    %v49 = vsel %vm47, %v38, 0
    %51 = vmatprep.subr.mxu0 0.0
    %52 = vmatpush1.msra.mxu0 %v39
    %53 = vmatprep.subr.mxu0 0.0
    %54 = vmatpush1.msra.mxu0 %v40
    %55 = vmatprep.subr.mxu0 0.0
    %56 = vmatpush1.msra.mxu0 %v41
    %57 = vmatprep.subr.mxu0 0.0
    %58 = vmatpush1.msra.mxu0 %v42
    %59 = vmatprep.subr.mxu0 0.0
    %60 = vmatpush1.msra.mxu0 %v43
    %61 = vmatprep.subr.mxu0 0.0
    %62 = vmatpush1.msra.mxu0 %v44
    %63 = vmatprep.subr.mxu0 0.0
    %64 = vmatpush1.msra.mxu0 %v45
    %65 = vmatprep.subr.mxu0 0.0
    %66 = vmatpush1.msra.mxu0 %v46
    %67 = vmatprep.subr.mxu0 0.0
    %68 = vmatpush1.msra.mxu0 0.0
    %69 = vmatprep.subr.mxu0 0.0
    %70 = vmatpush1.msra.mxu0 0.0
    %71 = vmatprep.subr.mxu0 0.0
    %72 = vmatpush1.msra.mxu0 0.0
    %73 = vmatprep.subr.mxu0 0.0
    %74 = vmatpush1.msra.mxu0 0.0
    %75 = vmatprep.subr.mxu0 0.0
    %76 = vmatpush1.msra.mxu0 0.0
    %77 = vmatprep.subr.mxu0 0.0
    %78 = vmatpush1.msra.mxu0 0.0
    %79 = vmatprep.subr.mxu0 0.0
    %80 = vmatpush1.msra.mxu0 0.0
    %81 = vmatprep.subr.mxu0 0.0
    %82 = vmatpush1.msra.mxu0 0.0
    %83 = vmatprep.subr.mxu0 0.0
    %84 = vmatpush1.msra.mxu0 0.0
    %85 = vmatprep.subr.mxu0 0.0
    %86 = vmatpush1.msra.mxu0 0.0
    %87 = vmatprep.subr.mxu0 0.0
    %88 = vmatpush1.msra.mxu0 0.0
    %89 = vmatprep.subr.mxu0 0.0
    %90 = vmatpush1.msra.mxu0 0.0
    %91 = vmatprep.subr.mxu0 0.0
    %92 = vmatpush1.msra.mxu0 0.0
    %93 = vmatprep.subr.mxu0 0.0
    %94 = vmatpush1.msra.mxu0 0.0
    %95 = vmatprep.subr.mxu0 0.0
    %96 = vmatpush1.msra.mxu0 0.0
    %97 = vmatprep.subr.mxu0 0.0
    %98 = vmatpush1.msra.mxu0 0.0
    %99 = vmatprep.subr.mxu0 0.0
    %100 = vmatpush1.msra.mxu0 0.0
    %101 = vmatprep.subr.mxu0 0.0
    %102 = vmatpush1.msra.mxu0 0.0
    %103 = vmatprep.subr.mxu0 0.0
    %104 = vmatpush1.msra.mxu0 0.0
    %105 = vmatprep.subr.mxu0 0.0
    %106 = vmatpush1.msra.mxu0 0.0
    %107 = vmatprep.subr.mxu0 0.0
    %108 = vmatpush1.msra.mxu0 0.0
    %109 = vmatprep.subr.mxu0 0.0
    %110 = vmatpush1.msra.mxu0 0.0
    %111 = vmatprep.subr.mxu0 0.0
    %112 = vmatpush1.msra.mxu0 0.0
    %113 = vmatprep.subr.mxu0 0.0
    %114 = vmatpush1.msra.mxu0 0.0
    %115 = vmatprep.mubr.f32.mxu0 0.0
    %116 = vmatmul.mubr.f32.gmra.mrb[0].mxu0 %v49
    %v117 = vpop.f32.mrb[0].mxu0
    %v118 = vadd.f32 0.0, %v117
    %v119 = vpop.f32.mrb[0].mxu0
    %120 = vdwg.mxu0
    %v121 = vlaneseq
    %v122 = vand.u32 %v121, 127
    %vm123 = vcmp.lt.s32.totalorder %v122, 8
    %v124 = vsel %vm123, %v118, -1e+11
    %125 = vmax.xlane.f32.xlu0 %v124
    %v126 = vpop.xlane.xlu0 %125
    %v127 = vsub.f32 %v124, %v126
    %v128 = vmul.f32 %v127, 1.442695
    %v129 = vpow.pop %v128
    %130 = vadd.xlane.f32.xlu0 %v129
    %v131 = vpop.xlane.xlu0 %130
    %v132 = vrcp.pop %v131
    %v133 = vmul.f32 %v129, %v132
    %134 = vst [vmem:[#allocation7] sm:$0xff] %v133
    // Predicated region
    $region18: #{tpu_custom_call.1} parent=1 // pred_check
      _
    $region19: #{tpu_custom_call.1} parent=1 // pred_check_branch
      %136 = sbr.rel (0) target = $region21
    $region20: #{tpu_custom_call.1} parent=1 // pred_region
      %s138 = ssub.s32 128, 128
      %139 = vsyncadd [#allocation4], %s138
      %s141 = sshll.u32 [#allocation7], 4
      %s142 = int_to_ptr.vmem [resolvable:$true] %s141
      %144 = dma.vmem_to_hbm [thread:$0]  %s142, 128, %s2, [#allocation4]
    $region21: #{tpu_custom_call.1} parent=1 // pred_fallthru
      _
    // Predicated region
    $region22: #{tpu_custom_call.1} parent=1 // pred_check
      _
    $region23: #{tpu_custom_call.1} parent=1 // pred_check_branch
      %146 = sbr.rel (0) target = $region25
    $region24: #{tpu_custom_call.1} parent=1 // pred_region
      %147 = dma.done [#allocation4], 128
    $region25: #{tpu_custom_call.1} parent=1 // pred_fallthru
      _
    %148 = vsyncpa [#allocation3], 1
    %149 = vsyncpa [#allocation6], 1
    %150 = vsyncpa [#allocation4], 1

// kernel: tpu_custom_call.1
$region0: #{tpu_custom_call.1}
  #allocation0 [shape = 'u32[]', space=smem, size = 0x4, offset = 0x4, fixed_abs, tag = 'smem constant byte address 0x4 - core index']
  #allocation1 [shape = 'u32[144,128]{1,0:T(1,128)}', space=vmem, size = 0x12000, scoped, tag = 'internal scratch']
  %s0 = inlined_call_operand.hbm [shape: f32[8,64], index: 0, kind: input, shape index: {}]
  %s1 = inlined_call_operand.hbm [shape: f32[64,128], index: 1, kind: input, shape index: {}]
  %s2 = inlined_call_operand.hbm [shape: f32[8,128], index: 2, kind: output, shape index: {}]
  %s3 = sld [smem:[#allocation0]]
  $region26: #{tpu_custom_call.1} parent=0
    _
  %s5 = ssub.s32 1, %s3
  %s6 = scalar_select 0, %s5, %s3
  $region1: #{tpu_custom_call.1} parent=0
    #allocation2 [shape = 'u8[4096]{0}', space=vmem, size = 0x1000, scoped, tag = 'input window, operand 0, single buffered']
    #allocation3 [shape = 's32[1]{0}', space=sflag, size = 0x4, scoped, tag = 'scoped memory for tpu_custom_call.1']
    #allocation4 [shape = 's32[1]{0}', space=sflag, size = 0x4, scoped, tag = 'scoped memory for tpu_custom_call.1']
    #allocation5 [shape = 'u8[32768]{0}', space=vmem, size = 0x8000, scoped, tag = 'input window, operand 1, single buffered']
    #allocation6 [shape = 's32[1]{0}', space=sflag, size = 0x4, scoped, tag = 'scoped memory for tpu_custom_call.1']
    #allocation7 [shape = 'u8[4096]{0}', space=vmem, size = 0x1000, scoped, tag = 'output window, operand 0, single buffered']
    %7 = vsyncpa [#allocation3], 0
    %8 = vsyncpa [#allocation6], 0
    %9 = vsyncpa [#allocation4], 0
    // Predicated region
    $region2: #{tpu_custom_call.1} parent=1 // pred_check
      _
    $region3: #{tpu_custom_call.1} parent=1 // pred_check_branch
      %11 = sbr.rel (0) target = $region5
    $region4: #{tpu_custom_call.1} parent=1 // pred_region
      %s13 = ssub.s32 128, 128
      %14 = vsyncadd [#allocation3], %s13
      %s16 = sshll.u32 [#allocation2], 4
      %s17 = int_to_ptr.vmem [resolvable:$true] %s16
      %19 = dma.hbm_to_vmem [thread:$0]  %s0, 128, %s17, [#allocation3]
    $region5: #{tpu_custom_call.1} parent=1 // pred_fallthru
      _
    // Predicated region
    $region6: #{tpu_custom_call.1} parent=1 // pred_check
      _
    $region7: #{tpu_custom_call.1} parent=1 // pred_check_branch
      %21 = sbr.rel (0) target = $region9
    $region8: #{tpu_custom_call.1} parent=1 // pred_region
      %s23 = ssub.s32 1024, 1024
      %24 = vsyncadd [#allocation6], %s23
      %s25 = sshll.u32 [#allocation5], 4
      %s26 = int_to_ptr.vmem [resolvable:$true] %s25
      %31 = dma.hbm_to_vmem [thread:$0]  %s1, 1024, %s26, [#allocation6], 128, 128, 8
    $region9: #{tpu_custom_call.1} parent=1 // pred_fallthru
      _
    // Predicated region
    $region10: #{tpu_custom_call.1} parent=1 // pred_check
      _
    $region11: #{tpu_custom_call.1} parent=1 // pred_check_branch
      %33 = sbr.rel (0) target = $region13
    $region12: #{tpu_custom_call.1} parent=1 // pred_region
      %34 = dma.done [#allocation3], 128
    $region13: #{tpu_custom_call.1} parent=1 // pred_fallthru
      _
    // Predicated region
    $region14: #{tpu_custom_call.1} parent=1 // pred_check
      _
    $region15: #{tpu_custom_call.1} parent=1 // pred_check_branch
      %36 = sbr.rel (0) target = $region17
    $region16: #{tpu_custom_call.1} parent=1 // pred_region
      %37 = dma.done [#allocation6], 1024
    $region17: #{tpu_custom_call.1} parent=1 // pred_fallthru
      _
    %v38 = vld [vmem:[#allocation2] sm:$0xff]
    %v39 = vld [vmem:[#allocation5] sm:$0xff]
    %v40 = vld [vmem:[#allocation5 + $0x8] sm:$0xff]
    %v41 = vld [vmem:[#allocation5 + $0x10] sm:$0xff]
    %v42 = vld [vmem:[#allocation5 + $0x18] sm:$0xff]
    %v43 = vld [vmem:[#allocation5 + $0x20] sm:$0xff]
    %v44 = vld [vmem:[#allocation5 + $0x28] sm:$0xff]
    %v45 = vld [vmem:[#allocation5 + $0x30] sm:$0xff]
    %v46 = vld [vmem:[#allocation5 + $0x38] sm:$0xff]
    %vm47 = vcmask 523264
    %v49 = vsel %vm47, %v38, 0
    %51 = vmatprep.subr.mxu0 0.0
    %52 = vmatpush1.msra.mxu0 %v39
    %53 = vmatprep.subr.mxu0 0.0
    %54 = vmatpush1.msra.mxu0 %v40
    %55 = vmatprep.subr.mxu0 0.0
    %56 = vmatpush1.msra.mxu0 %v41
    %57 = vmatprep.subr.mxu0 0.0
    %58 = vmatpush1.msra.mxu0 %v42
    %59 = vmatprep.subr.mxu0 0.0
    %60 = vmatpush1.msra.mxu0 %v43
    %61 = vmatprep.subr.mxu0 0.0
    %62 = vmatpush1.msra.mxu0 %v44
    %63 = vmatprep.subr.mxu0 0.0
    %64 = vmatpush1.msra.mxu0 %v45
    %65 = vmatprep.subr.mxu0 0.0
    %66 = vmatpush1.msra.mxu0 %v46
    %67 = vmatprep.subr.mxu0 0.0
    %68 = vmatpush1.msra.mxu0 0.0
    %69 = vmatprep.subr.mxu0 0.0
    %70 = vmatpush1.msra.mxu0 0.0
    %71 = vmatprep.subr.mxu0 0.0
    %72 = vmatpush1.msra.mxu0 0.0
    %73 = vmatprep.subr.mxu0 0.0
    %74 = vmatpush1.msra.mxu0 0.0
    %75 = vmatprep.subr.mxu0 0.0
    %76 = vmatpush1.msra.mxu0 0.0
    %77 = vmatprep.subr.mxu0 0.0
    %78 = vmatpush1.msra.mxu0 0.0
    %79 = vmatprep.subr.mxu0 0.0
    %80 = vmatpush1.msra.mxu0 0.0
    %81 = vmatprep.subr.mxu0 0.0
    %82 = vmatpush1.msra.mxu0 0.0
    %83 = vmatprep.subr.mxu0 0.0
    %84 = vmatpush1.msra.mxu0 0.0
    %85 = vmatprep.subr.mxu0 0.0
    %86 = vmatpush1.msra.mxu0 0.0
    %87 = vmatprep.subr.mxu0 0.0
    %88 = vmatpush1.msra.mxu0 0.0
    %89 = vmatprep.subr.mxu0 0.0
    %90 = vmatpush1.msra.mxu0 0.0
    %91 = vmatprep.subr.mxu0 0.0
    %92 = vmatpush1.msra.mxu0 0.0
    %93 = vmatprep.subr.mxu0 0.0
    %94 = vmatpush1.msra.mxu0 0.0
    %95 = vmatprep.subr.mxu0 0.0
    %96 = vmatpush1.msra.mxu0 0.0
    %97 = vmatprep.subr.mxu0 0.0
    %98 = vmatpush1.msra.mxu0 0.0
    %99 = vmatprep.subr.mxu0 0.0
    %100 = vmatpush1.msra.mxu0 0.0
    %101 = vmatprep.subr.mxu0 0.0
    %102 = vmatpush1.msra.mxu0 0.0
    %103 = vmatprep.subr.mxu0 0.0
    %104 = vmatpush1.msra.mxu0 0.0
    %105 = vmatprep.subr.mxu0 0.0
    %106 = vmatpush1.msra.mxu0 0.0
    %107 = vmatprep.subr.mxu0 0.0
    %108 = vmatpush1.msra.mxu0 0.0
    %109 = vmatprep.subr.mxu0 0.0
    %110 = vmatpush1.msra.mxu0 0.0
    %111 = vmatprep.subr.mxu0 0.0
    %112 = vmatpush1.msra.mxu0 0.0
    %113 = vmatprep.subr.mxu0 0.0
    %114 = vmatpush1.msra.mxu0 0.0
    %115 = vmatprep.mubr.f32.mxu0 0.0
    %116 = vmatmul.mubr.f32.gmra.mrb[0].mxu0 %v49
    %v117 = vpop.f32.mrb[0].mxu0
    %v118 = vadd.f32 0.0, %v117
    %v119 = vpop.f32.mrb[0].mxu0
    %120 = vdwg.mxu0
    %v121 = vlaneseq
    %v122 = vand.u32 %v121, 127
    %vm123 = vcmp.lt.s32.totalorder %v122, 8
    %v124 = vsel %vm123, %v118, -1e+11
    %125 = vmax.xlane.f32.xlu0 %v124
    %v126 = vpop.xlane.xlu0 %125
    %v127 = vsub.f32 %v124, %v126
    %v128 = vmul.f32 %v127, 1.442695
    %v129 = vpow.pop %v128
    %130 = vadd.xlane.f32.xlu0 %v129
    %v131 = vpop.xlane.xlu0 %130
    %v132 = vrcp.pop %v131
    %v133 = vmul.f32 %v129, %v132
    %134 = vst [vmem:[#allocation7] sm:$0xff] %v133
    // Predicated region
    $region18: #{tpu_custom_call.1} parent=1 // pred_check
      _
    $region19: #{tpu_custom_call.1} parent=1 // pred_check_branch
      %136 = sbr.rel (0) target = $region21
    $region20: #{tpu_custom_call.1} parent=1 // pred_region
      %s138 = ssub.s32 128, 128
      %139 = vsyncadd [#allocation4], %s138
      %s141 = sshll.u32 [#allocation7], 4
      %s142 = int_to_ptr.vmem [resolvable:$true] %s141
      %144 = dma.vmem_to_hbm [thread:$0]  %s142, 128, %s2, [#allocation4]
    $region21: #{tpu_custom_call.1} parent=1 // pred_fallthru
      _
    // Predicated region
    $region22: #{tpu_custom_call.1} parent=1 // pred_check
      _
    $region23: #{tpu_custom_call.1} parent=1 // pred_check_branch
      %146 = sbr.rel (0) target = $region25
    $region24: #{tpu_custom_call.1} parent=1 // pred_region
      %147 = dma.done [#allocation4], 128
    $region25: #{tpu_custom_call.1} parent=1 // pred_fallthru
      _
    %148 = vsyncpa [#allocation3], 1
    %149 = vsyncpa [#allocation6], 1
    %150 = vsyncpa [#allocation4], 1

</llo_original>
